<compile_context>
chip_gen: v6e
topology: v6e:2x2x1
jax: 0.10.0
libtpu: 0.0.40
codegen_flags: <defaults>
</compile_context>

<pallas_src>
import jax
import jax.numpy as jnp
from jax import lax
from jax.experimental import pallas as pl
from jax.experimental.pallas import tpu as pltpu


# ----------------------------- kernels --------------------------------------


def _odefunc_kernel_resident(a_ref, xwt_ref, b_ref, o_ref):
    # a_ref:   (TM, N)  row tile of A             (double-buffered)
    # xwt_ref: (N, H)   x @ W^T, grid-invariant   (single-buffered, resident)
    # b_ref:   (1, H)   bias, grid-invariant      (single-buffered, resident)
    # o_ref:   (TM, H)  output tile
    z = jnp.dot(a_ref[...], xwt_ref[...], preferred_element_type=jnp.float32)
    z = z + b_ref[...]
    # TODO(synk): nn.Dropout is identity in eval mode / p=0.0, so omitted.
    o_ref[...] = jnp.maximum(z, 0.0).astype(o_ref.dtype)


def _odefunc_kernel_ktiled(a_ref, xwt_ref, b_ref, o_ref, acc_ref):
    # a_ref:   (TM, TK) tile of A                 (double-buffered)
    # xwt_ref: (TK, H)  tile of x @ W^T           (double-buffered)
    # b_ref:   (1, H)   bias, grid-invariant      (single-buffered)
    # o_ref:   (TM, H)  output tile (same block across the k axis)
    # acc_ref: (TM, H)  f32 accumulator scratch
    k = pl.program_id(1)

    @pl.when(k == 0)
    def _():
        acc_ref[...] = jnp.zeros_like(acc_ref)

    acc_ref[...] += jnp.dot(a_ref[...], xwt_ref[...],
                            preferred_element_type=jnp.float32)

    @pl.when(k == pl.num_programs(1) - 1)
    def _():
        z = acc_ref[...] + b_ref[...]
        o_ref[...] = jnp.maximum(z, 0.0).astype(o_ref.dtype)


# --------------------------- chip / tile selection ---------------------------


def _chip_params():
    """(per-core VMEM bytes, dual_tensorcore?) with conservative fallbacks."""
    vmem = None
    try:
        info = pltpu.get_tpu_info()
        v = int(getattr(info, "vmem_capacity_bytes", 0) or 0)
        if v > 0:
            vmem = v
    except Exception:
        vmem = None

    kind = ""
    try:
        kind = jax.devices()[0].device_kind.lower()
    except Exception:
        kind = ""
    dual_tc = "7" in kind  # only v7x-class chips have 2 TensorCores per chip

    if vmem is None:
        vmem = (64 << 20) if dual_tc else (128 << 20)
    if dual_tc:
        vmem = min(vmem, 64 << 20)          # v7x physical VMEM is 64 MiB / TC
    vmem = max(32 << 20, min(vmem, 128 << 20))
    return vmem, dual_tc


def _pick_tiles(N, H, a_isz, o_isz, budget, dual_tc):
    """Return (tm, tk). tk=None means xWt stays fully resident in VMEM."""
    resident = (N * H + H) * a_isz                       # xWt + bias (1 buffer)
    cands = [t for t in (1024, 512, 256, 128) if t <= N] or [N]

    fitting = None
    for tm in cands:                                     # descending
        ws = resident + 2 * tm * (N * a_isz + H * o_isz)  # A tile + out, 2 bufs
        if ws > budget:
            continue
        if fitting is None:
            fitting = tm                                 # largest fitting tile
        if (not dual_tc) or pl.cdiv(N, tm) >= 2:
            # single-TC: take the largest fitting tile;
            # dual-TC (v7x): largest fitting tile that still gives >= 2 steps.
            return tm, None
    if fitting is not None:
        return fitting, None

    # Large N: resident xWt blows the budget -> tile the contraction axis too.
    tk = None
    for t in (2048, 1024, 512, 256, 128):
        if N % t == 0:
            tk = t
            break
    if tk is None:
        # TODO(synk): pad N up to a multiple of 128 (zero-padded A columns /
        # xWt rows) instead of falling back to a tiny resident row tile.
        return min(128, N), None

    for tm in (512, 256, 128):
        ws = (H * a_isz                                   # bias
              + 2 * (tm * tk + tk * H) * a_isz            # A + xWt tiles, 2 bufs
              + tm * H * 4                                # f32 accumulator
              + 2 * tm * H * o_isz)                       # out tile, 2 bufs
        if ws <= budget or tm == 128:
            return tm, tk
    return 128, tk


# ------------------------------- wrapper -------------------------------------


def odefunc_forward(A, x, W, b, *, tm=None, tk=None, compute_dtype=jnp.bfloat16):
    """relu(A @ (x @ W^T) + b) == ODEFunc.forward (dense A, eval mode).

    compute_dtype (default bf16) casts A and xWt before the big GEMM; the MXU
    accumulates in f32.  Pass compute_dtype=None for a pure-f32 path.
    """
    N, H = x.shape
    assert A.shape == (N, N)
    assert W.shape == (H, H)
    assert b.shape == (H,)
    out_dtype = x.dtype

    # One-shot (N,H)x(H,H) GEMM, contraction on W's dim 1 == x @ W^T with no
    # explicit transpose; stays inside the caller's jit so XLA fuses dispatch.
    xwt = lax.dot_general(x, W, dimension_numbers=(((1,), (1,)), ((), ())),
                          preferred_element_type=jnp.float32)

    if compute_dtype is not None:
        A = A.astype(compute_dtype)
        xwt = xwt.astype(compute_dtype)
    else:
        xwt = xwt.astype(A.dtype)
    b2 = b.reshape(1, H).astype(jnp.float32)

    a_isz = jnp.dtype(A.dtype).itemsize
    o_isz = jnp.dtype(out_dtype).itemsize

    vmem_bytes, dual_tc = _chip_params()
    budget = int(0.7 * vmem_bytes)

    if tm is None:
        tm, auto_tk = _pick_tiles(N, H, a_isz, o_isz, budget, dual_tc)
        if tk is None:
            tk = auto_tk
    if tk is not None:
        assert N % tk == 0, "contraction tile tk must divide N"

    cost = pl.CostEstimate(
        flops=2 * N * N * H,
        transcendentals=0,
        bytes_accessed=(N * N + N * H + H) * a_isz + N * H * o_isz,
    )

    if tk is None:
        # ------------------ resident-xWt path (small / medium N) ------------
        ws = (N * H + H) * a_isz + 2 * tm * (N * a_isz + H * o_isz)
        vmem_limit = min(int(0.85 * vmem_bytes), max(ws + (8 << 20), 32 << 20))
        grid = (pl.cdiv(N, tm),)
        return pl.pallas_call(
            _odefunc_kernel_resident,
            out_shape=jax.ShapeDtypeStruct((N, H), out_dtype),
            grid_spec=pltpu.PrefetchScalarGridSpec(
                num_scalar_prefetch=0,
                grid=grid,
                in_specs=[
                    # A row tile: changes every step -> default double buffering.
                    pl.BlockSpec((tm, N), lambda i: (i, 0)),
                    # Grid-invariant operands -> single-buffered (VMEM saver).
                    pl.BlockSpec((N, H), lambda i: (0, 0),
                                 pipeline_mode=pl.Buffered(1)),
                    pl.BlockSpec((1, H), lambda i: (0, 0),
                                 pipeline_mode=pl.Buffered(1)),
                ],
                out_specs=pl.BlockSpec((tm, H), lambda i: (i, 0)),
            ),
            compiler_params=pltpu.CompilerParams(
                dimension_semantics=("parallel",),
                vmem_limit_bytes=vmem_limit,
            ),
            cost_estimate=cost,
        )(A, xwt, b2)

    # ---------------------- K-tiled path (large N) ---------------------------
    ws = (H * a_isz + 2 * (tm * tk + tk * H) * a_isz
          + tm * H * 4 + 2 * tm * H * o_isz)
    vmem_limit = min(int(0.85 * vmem_bytes), max(ws + (8 << 20), 32 << 20))
    grid = (pl.cdiv(N, tm), N // tk)
    return pl.pallas_call(
        _odefunc_kernel_ktiled,
        out_shape=jax.ShapeDtypeStruct((N, H), out_dtype),
        grid_spec=pltpu.PrefetchScalarGridSpec(
            num_scalar_prefetch=0,
            grid=grid,
            in_specs=[
                pl.BlockSpec((tm, tk), lambda i, k: (i, k)),
                pl.BlockSpec((tk, H), lambda i, k: (k, 0)),
                pl.BlockSpec((1, H), lambda i, k: (0, 0),
                             pipeline_mode=pl.Buffered(1)),
            ],
            out_specs=pl.BlockSpec((tm, H), lambda i, k: (i, 0)),
            scratch_shapes=[pltpu.VMEM((tm, H), jnp.float32)],
        ),
        compiler_params=pltpu.CompilerParams(
            dimension_semantics=("parallel", "arbitrary"),
            vmem_limit_bytes=vmem_limit,
        ),
        cost_estimate=cost,
    )(A, xwt, b2)


# -------------------------------- demo ---------------------------------------


if __name__ == "__main__":
    # Small shapes consistent with the module: N_node x hidden state matrix.
    N_node = 256
    hidden = 128

    key = jax.random.PRNGKey(0)
    k_a, k_x, k_w, k_b = jax.random.split(key, 4)

    A = jax.random.normal(k_a, (N_node, N_node), dtype=jnp.float32) / jnp.sqrt(N_node)
    x = jax.random.normal(k_x, (N_node, hidden), dtype=jnp.float32)
    W = jax.random.normal(k_w, (hidden, hidden), dtype=jnp.float32) / jnp.sqrt(hidden)
    b = jax.random.normal(k_b, (hidden,), dtype=jnp.float32) * 0.1

    # Default path: auto tile selection, bf16 compute, resident xWt.
    fwd = jax.jit(odefunc_forward)
    out = jax.block_until_ready(fwd(A, x, W, b))

    # K-tiled (contraction-tiled) path, forced small tiles for coverage.
    fwd_kt = jax.jit(lambda A, x, W, b: odefunc_forward(A, x, W, b, tm=128, tk=128))
    out_kt = jax.block_until_ready(fwd_kt(A, x, W, b))

    # Reference matching the kernel's arithmetic (bf16-rounded operands,
    # reassociated order, f32 accumulation).
    xwt_f32 = x @ W.T
    A_bf = A.astype(jnp.bfloat16).astype(jnp.float32)
    xwt_bf = xwt_f32.astype(jnp.bfloat16).astype(jnp.float32)
    ref_bf = jnp.maximum(A_bf @ xwt_bf + b[None, :], 0.0)

    # Pure-f32 reference in the original (un-reassociated) PyTorch order.
    ref_f32 = jnp.maximum((A @ x) @ W.T + b[None, :], 0.0)

    assert out.shape == (N_node, hidden)
    assert out_kt.shape == (N_node, hidden)
    assert jnp.allclose(out, ref_bf, atol=2e-3, rtol=2e-3), "resident path mismatch"
    assert jnp.allclose(out_kt, ref_bf, atol=2e-3, rtol=2e-3), "k-tiled path mismatch"
    assert jnp.allclose(out, ref_f32, atol=5e-2, rtol=5e-2), "bf16 drift vs f32 ref"

    print("KERNEL_OK")
</pallas_src>

<mosaic_0001>
module attributes {stable_mosaic.version = 11 : i64} {
  func.func @_odefunc_kernel_resident(%arg0: i32, %arg1: memref<256x256xbf16, #tpu.memory_space<vmem>>, %arg2: memref<256x128xbf16, #tpu.memory_space<vmem>>, %arg3: memref<1x128xf32, #tpu.memory_space<vmem>>, %arg4: memref<256x128xf32, #tpu.memory_space<vmem>>) attributes {dimension_semantics = [#tpu.dimension_semantics<parallel>], iteration_bounds = array<i64: 1>, scalar_prefetch = 0 : i64, scratch_operands = 0 : i64, tpu.core_type = #tpu.core_type<tc>, window_params = [{transform_indices = @transform_0, window_bounds = array<i64: 256, 256>}, {pipeline_mode = #tpu.pipeline_mode<synchronous>, transform_indices = @transform_1, window_bounds = array<i64: 256, 128>}, {pipeline_mode = #tpu.pipeline_mode<synchronous>, transform_indices = @transform_2, window_bounds = array<i64: 1, 128>}, {transform_indices = @transform_3, window_bounds = array<i64: 256, 128>}]} {
    %c0 = arith.constant 0 : index
    %c0_0 = arith.constant 0 : index
    %0 = vector.load %arg1[%c0, %c0_0] : memref<256x256xbf16, #tpu.memory_space<vmem>>, vector<256x256xbf16>
    %c0_1 = arith.constant 0 : index
    %c0_2 = arith.constant 0 : index
    %1 = vector.load %arg2[%c0_1, %c0_2] : memref<256x128xbf16, #tpu.memory_space<vmem>>, vector<256x128xbf16>
    %cst = arith.constant dense<0.000000e+00> : vector<256x128xf32>
    %2 = tpu.matmul %0, %1, %cst {dimension_numbers = #tpu.dot_dimension_numbers<[1], [0], [0], [1], [0, 0, 1, 1], [], []>} : vector<256x256xbf16>, vector<256x128xbf16>, vector<256x128xf32> -> vector<256x128xf32>
    %c0_3 = arith.constant 0 : index
    %c0_4 = arith.constant 0 : index
    %3 = vector.load %arg3[%c0_3, %c0_4] : memref<1x128xf32, #tpu.memory_space<vmem>>, vector<1x128xf32>
    %4 = vector.broadcast %3 : vector<1x128xf32> to vector<256x128xf32>
    %5 = arith.addf %2, %4 : vector<256x128xf32>
    %cst_5 = arith.constant 0.000000e+00 : f32
    %6 = vector.broadcast %cst_5 : f32 to vector<256x128xf32>
    %7 = arith.maximumf %5, %6 : vector<256x128xf32>
    %c0_6 = arith.constant 0 : index
    %c0_7 = arith.constant 0 : index
    %8 = vector.load %arg4[%c0_6, %c0_7] : memref<256x128xf32, #tpu.memory_space<vmem>>, vector<256x128xf32>
    tpu.vector_store %arg4[%c0_6, %c0_7], %7 {strides = array<i32>} : memref<256x128xf32, #tpu.memory_space<vmem>>, vector<256x128xf32>,
    return
  }
  func.func @transform_0(%arg0: i32) -> (i32, i32) {
    %c0_i32 = arith.constant 0 : i32
    %c0_i32_0 = arith.constant 0 : i32
    return %arg0, %c0_i32 : i32, i32
  }
  func.func @transform_1(%arg0: i32) -> (i32, i32) {
    %c0_i32 = arith.constant 0 : i32
    %c0_i32_0 = arith.constant 0 : i32
    %c0_i32_1 = arith.constant 0 : i32
    return %c0_i32, %c0_i32_0 : i32, i32
  }
  func.func @transform_2(%arg0: i32) -> (i32, i32) {
    %c0_i32 = arith.constant 0 : i32
    %c0_i32_0 = arith.constant 0 : i32
    %c0_i32_1 = arith.constant 0 : i32
    return %c0_i32, %c0_i32_0 : i32, i32
  }
  func.func @transform_3(%arg0: i32) -> (i32, i32) {
    %c0_i32 = arith.constant 0 : i32
    %c0_i32_0 = arith.constant 0 : i32
    return %arg0, %c0_i32 : i32, i32
  }
}

</mosaic_0001>

<llo_original>
// kernel: odefunc_forward.1
$region0: #{odefunc_forward.1}
  #allocation0 [shape = 'u32[]', space=smem, size = 0x4, offset = 0x4, fixed_abs, tag = 'smem constant byte address 0x4 - core index']
  #allocation1 [shape = 'u32[144,128]{1,0:T(1,128)}', space=vmem, size = 0x12000, scoped, tag = 'internal scratch']
  %s0 = inlined_call_operand.vmem [shape: bf16[256,256], index: 0, kind: input, shape index: {}]
  %s1 = inlined_call_operand.vmem [shape: bf16[256,128], index: 1, kind: input, shape index: {}]
  %s2 = inlined_call_operand.vmem [shape: f32[1,128], index: 2, kind: input, shape index: {}]
  %s3 = inlined_call_operand.hbm [shape: f32[256,128], index: 3, kind: output, shape index: {}]
  %s4 = sld [smem:[#allocation0]]
  $region22: #{odefunc_forward.1} parent=0
    _
  %s6 = ssub.s32 1, %s4
  %s7 = scalar_select 0, %s6, %s4
  $region1: #{odefunc_forward.1} parent=0
    #allocation2 [shape = 'u8[131072]{0}', space=vmem, size = 0x20000, scoped, tag = 'output window, operand 0, single buffered']
    #allocation3 [shape = 's32[1]{0}', space=sflag, size = 0x4, scoped, tag = 'scoped memory for odefunc_forward.1']
    %8 = vsyncpa [#allocation3], 0
    // Predicated region
    $region2: #{odefunc_forward.1} parent=1 // pred_check
      _
    $region3: #{odefunc_forward.1} parent=1 // pred_check_branch
      %10 = sbr.rel (0) target = $region5
    $region4: #{odefunc_forward.1} parent=1 // pred_region
      _
    $region5: #{odefunc_forward.1} parent=1 // pred_fallthru
      _
    // Predicated region
    $region6: #{odefunc_forward.1} parent=1 // pred_check
      _
    $region7: #{odefunc_forward.1} parent=1 // pred_check_branch
      %12 = sbr.rel (0) target = $region9
    $region8: #{odefunc_forward.1} parent=1 // pred_region
      _
    $region9: #{odefunc_forward.1} parent=1 // pred_fallthru
      _
    // Predicated region
    $region10: #{odefunc_forward.1} parent=1 // pred_check
      _
    $region11: #{odefunc_forward.1} parent=1 // pred_check_branch
      %14 = sbr.rel (0) target = $region13
    $region12: #{odefunc_forward.1} parent=1 // pred_region
      _
    $region13: #{odefunc_forward.1} parent=1 // pred_fallthru
      _
    %v16 = vld [vmem:[%s0] sm:$0xff]
    %v17 = vld [vmem:[%s0 + $0x8] sm:$0xff]
    %v18 = vld [vmem:[%s0 + $0x10] sm:$0xff]
    %v19 = vld [vmem:[%s0 + $0x18] sm:$0xff]
    %v20 = vld [vmem:[%s0 + $0x20] sm:$0xff]
    %v21 = vld [vmem:[%s0 + $0x28] sm:$0xff]
    %v22 = vld [vmem:[%s0 + $0x30] sm:$0xff]
    %v23 = vld [vmem:[%s0 + $0x38] sm:$0xff]
    %v24 = vld [vmem:[%s0 + $0x40] sm:$0xff]
    %v25 = vld [vmem:[%s0 + $0x48] sm:$0xff]
    %v26 = vld [vmem:[%s0 + $0x50] sm:$0xff]
    %v27 = vld [vmem:[%s0 + $0x58] sm:$0xff]
    %v28 = vld [vmem:[%s0 + $0x60] sm:$0xff]
    %v29 = vld [vmem:[%s0 + $0x68] sm:$0xff]
    %v30 = vld [vmem:[%s0 + $0x70] sm:$0xff]
    %v31 = vld [vmem:[%s0 + $0x78] sm:$0xff]
    %v32 = vld [vmem:[%s0 + $0x80] sm:$0xff]
    %v33 = vld [vmem:[%s0 + $0x88] sm:$0xff]
    %v34 = vld [vmem:[%s0 + $0x90] sm:$0xff]
    %v35 = vld [vmem:[%s0 + $0x98] sm:$0xff]
    %v36 = vld [vmem:[%s0 + $0xa0] sm:$0xff]
    %v37 = vld [vmem:[%s0 + $0xa8] sm:$0xff]
    %v38 = vld [vmem:[%s0 + $0xb0] sm:$0xff]
    %v39 = vld [vmem:[%s0 + $0xb8] sm:$0xff]
    %v40 = vld [vmem:[%s0 + $0xc0] sm:$0xff]
    %v41 = vld [vmem:[%s0 + $0xc8] sm:$0xff]
    %v42 = vld [vmem:[%s0 + $0xd0] sm:$0xff]
    %v43 = vld [vmem:[%s0 + $0xd8] sm:$0xff]
    %v44 = vld [vmem:[%s0 + $0xe0] sm:$0xff]
    %v45 = vld [vmem:[%s0 + $0xe8] sm:$0xff]
    %v46 = vld [vmem:[%s0 + $0xf0] sm:$0xff]
    %v47 = vld [vmem:[%s0 + $0xf8] sm:$0xff]
    %v48 = vld [vmem:[%s1] sm:$0xf]
    %v49 = vld [vmem:[%s1 + $0x4] sm:$0xf]
    %v50 = vld [vmem:[%s1 + $0x8] sm:$0xf]
    %v51 = vld [vmem:[%s1 + $0xc] sm:$0xf]
    %v52 = vld [vmem:[%s1 + $0x10] sm:$0xf]
    %v53 = vld [vmem:[%s1 + $0x14] sm:$0xf]
    %v54 = vld [vmem:[%s1 + $0x18] sm:$0xf]
    %v55 = vld [vmem:[%s1 + $0x1c] sm:$0xf]
    %v56 = vld [vmem:[%s1 + $0x20] sm:$0xf]
    %v57 = vld [vmem:[%s1 + $0x24] sm:$0xf]
    %v58 = vld [vmem:[%s1 + $0x28] sm:$0xf]
    %v59 = vld [vmem:[%s1 + $0x2c] sm:$0xf]
    %v60 = vld [vmem:[%s1 + $0x30] sm:$0xf]
    %v61 = vld [vmem:[%s1 + $0x34] sm:$0xf]
    %v62 = vld [vmem:[%s1 + $0x38] sm:$0xf]
    %v63 = vld [vmem:[%s1 + $0x3c] sm:$0xf]
    %v64 = vld [vmem:[%s1 + $0x40] sm:$0xf]
    %v65 = vld [vmem:[%s1 + $0x44] sm:$0xf]
    %v66 = vld [vmem:[%s1 + $0x48] sm:$0xf]
    %v67 = vld [vmem:[%s1 + $0x4c] sm:$0xf]
    %v68 = vld [vmem:[%s1 + $0x50] sm:$0xf]
    %v69 = vld [vmem:[%s1 + $0x54] sm:$0xf]
    %v70 = vld [vmem:[%s1 + $0x58] sm:$0xf]
    %v71 = vld [vmem:[%s1 + $0x5c] sm:$0xf]
    %v72 = vld [vmem:[%s1 + $0x60] sm:$0xf]
    %v73 = vld [vmem:[%s1 + $0x64] sm:$0xf]
    %v74 = vld [vmem:[%s1 + $0x68] sm:$0xf]
    %v75 = vld [vmem:[%s1 + $0x6c] sm:$0xf]
    %v76 = vld [vmem:[%s1 + $0x70] sm:$0xf]
    %v77 = vld [vmem:[%s1 + $0x74] sm:$0xf]
    %v78 = vld [vmem:[%s1 + $0x78] sm:$0xf]
    %v79 = vld [vmem:[%s1 + $0x7c] sm:$0xf]
    %v80 = vld [vmem:[%s2] sm:$0x1]
    %v82 = vlaneseq
    %v83 = vshrl.u32 %v82, 7
    %v84 = vsub.s32 0, %v83
    %v85 = vrot.slane %v80, %v84
    %v119 = vunpack.c.l.b16 %v16
    %v120 = vunpack.c.h.b16 %v16
    %v121 = vunpack.c.l.b16 %v17
    %v122 = vunpack.c.h.b16 %v17
    %v123 = vunpack.c.l.b16 %v18
    %v124 = vunpack.c.h.b16 %v18
    %v125 = vunpack.c.l.b16 %v19
    %v126 = vunpack.c.h.b16 %v19
    %v127 = vunpack.c.l.b16 %v20
    %v128 = vunpack.c.h.b16 %v20
    %v129 = vunpack.c.l.b16 %v21
    %v130 = vunpack.c.h.b16 %v21
    %v131 = vunpack.c.l.b16 %v22
    %v132 = vunpack.c.h.b16 %v22
    %v133 = vunpack.c.l.b16 %v23
    %v134 = vunpack.c.h.b16 %v23
    %v135 = vunpack.c.l.b16 %v24
    %v136 = vunpack.c.h.b16 %v24
    %v137 = vunpack.c.l.b16 %v25
    %v138 = vunpack.c.h.b16 %v25
    %v139 = vunpack.c.l.b16 %v26
    %v140 = vunpack.c.h.b16 %v26
    %v141 = vunpack.c.l.b16 %v27
    %v142 = vunpack.c.h.b16 %v27
    %v143 = vunpack.c.l.b16 %v28
    %v144 = vunpack.c.h.b16 %v28
    %v145 = vunpack.c.l.b16 %v29
    %v146 = vunpack.c.h.b16 %v29
    %v147 = vunpack.c.l.b16 %v30
    %v148 = vunpack.c.h.b16 %v30
    %v149 = vunpack.c.l.b16 %v31
    %v150 = vunpack.c.h.b16 %v31
    %v151 = vunpack.c.l.b16 %v32
    %v152 = vunpack.c.h.b16 %v32
    %v153 = vunpack.c.l.b16 %v33
    %v154 = vunpack.c.h.b16 %v33
    %v155 = vunpack.c.l.b16 %v34
    %v156 = vunpack.c.h.b16 %v34
    %v157 = vunpack.c.l.b16 %v35
    %v158 = vunpack.c.h.b16 %v35
    %v159 = vunpack.c.l.b16 %v36
    %v160 = vunpack.c.h.b16 %v36
    %v161 = vunpack.c.l.b16 %v37
    %v162 = vunpack.c.h.b16 %v37
    %v163 = vunpack.c.l.b16 %v38
    %v164 = vunpack.c.h.b16 %v38
    %v165 = vunpack.c.l.b16 %v39
    %v166 = vunpack.c.h.b16 %v39
    %v167 = vunpack.c.l.b16 %v40
    %v168 = vunpack.c.h.b16 %v40
    %v169 = vunpack.c.l.b16 %v41
    %v170 = vunpack.c.h.b16 %v41
    %v171 = vunpack.c.l.b16 %v42
    %v172 = vunpack.c.h.b16 %v42
    %v173 = vunpack.c.l.b16 %v43
    %v174 = vunpack.c.h.b16 %v43
    %v175 = vunpack.c.l.b16 %v44
    %v176 = vunpack.c.h.b16 %v44
    %v177 = vunpack.c.l.b16 %v45
    %v178 = vunpack.c.h.b16 %v45
    %v179 = vunpack.c.l.b16 %v46
    %v180 = vunpack.c.h.b16 %v46
    %v181 = vunpack.c.l.b16 %v47
    %v182 = vunpack.c.h.b16 %v47
    %v183 = vpack.c.b16 %v121, %v119
    %v184 = vpack.c.b16 %v122, %v120
    %v185 = vpack.c.b16 %v125, %v123
    %v186 = vpack.c.b16 %v126, %v124
    %v187 = vpack.c.b16 %v129, %v127
    %v188 = vpack.c.b16 %v130, %v128
    %v189 = vpack.c.b16 %v133, %v131
    %v190 = vpack.c.b16 %v134, %v132
    %v191 = vpack.c.b16 %v137, %v135
    %v192 = vpack.c.b16 %v138, %v136
    %v193 = vpack.c.b16 %v141, %v139
    %v194 = vpack.c.b16 %v142, %v140
    %v195 = vpack.c.b16 %v145, %v143
    %v196 = vpack.c.b16 %v146, %v144
    %v197 = vpack.c.b16 %v149, %v147
    %v198 = vpack.c.b16 %v150, %v148
    %v199 = vpack.c.b16 %v153, %v151
    %v200 = vpack.c.b16 %v154, %v152
    %v201 = vpack.c.b16 %v157, %v155
    %v202 = vpack.c.b16 %v158, %v156
    %v203 = vpack.c.b16 %v161, %v159
    %v204 = vpack.c.b16 %v162, %v160
    %v205 = vpack.c.b16 %v165, %v163
    %v206 = vpack.c.b16 %v166, %v164
    %v207 = vpack.c.b16 %v169, %v167
    %v208 = vpack.c.b16 %v170, %v168
    %v209 = vpack.c.b16 %v173, %v171
    %v210 = vpack.c.b16 %v174, %v172
    %v211 = vpack.c.b16 %v177, %v175
    %v212 = vpack.c.b16 %v178, %v176
    %v213 = vpack.c.b16 %v181, %v179
    %v214 = vpack.c.b16 %v182, %v180
    %v279 = vunpack.c.l.b16 %v48
    %v280 = vunpack.c.l.b16 %v49
    %v281 = vunpack.c.l.b16 %v50
    %v282 = vunpack.c.l.b16 %v51
    %v283 = vunpack.c.l.b16 %v52
    %v284 = vunpack.c.l.b16 %v53
    %v285 = vunpack.c.l.b16 %v54
    %v286 = vunpack.c.l.b16 %v55
    %v287 = vunpack.c.l.b16 %v56
    %v288 = vunpack.c.l.b16 %v57
    %v289 = vunpack.c.l.b16 %v58
    %v290 = vunpack.c.l.b16 %v59
    %v291 = vunpack.c.l.b16 %v60
    %v292 = vunpack.c.l.b16 %v61
    %v293 = vunpack.c.l.b16 %v62
    %v294 = vunpack.c.l.b16 %v63
    %v295 = vunpack.c.l.b16 %v64
    %v296 = vunpack.c.l.b16 %v65
    %v297 = vunpack.c.l.b16 %v66
    %v298 = vunpack.c.l.b16 %v67
    %v299 = vunpack.c.l.b16 %v68
    %v300 = vunpack.c.l.b16 %v69
    %v301 = vunpack.c.l.b16 %v70
    %v302 = vunpack.c.l.b16 %v71
    %v303 = vunpack.c.l.b16 %v72
    %v304 = vunpack.c.l.b16 %v73
    %v305 = vunpack.c.l.b16 %v74
    %v306 = vunpack.c.l.b16 %v75
    %v307 = vunpack.c.l.b16 %v76
    %v308 = vunpack.c.l.b16 %v77
    %v309 = vunpack.c.l.b16 %v78
    %v310 = vunpack.c.l.b16 %v79
    %v311 = vpack.c.b16 %v280, %v279
    %v312 = vpack.c.b16 %v282, %v281
    %v313 = vpack.c.b16 %v284, %v283
    %v314 = vpack.c.b16 %v286, %v285
    %v315 = vpack.c.b16 %v288, %v287
    %v316 = vpack.c.b16 %v290, %v289
    %v317 = vpack.c.b16 %v292, %v291
    %v318 = vpack.c.b16 %v294, %v293
    %v319 = vpack.c.b16 %v296, %v295
    %v320 = vpack.c.b16 %v298, %v297
    %v321 = vpack.c.b16 %v300, %v299
    %v322 = vpack.c.b16 %v302, %v301
    %v323 = vpack.c.b16 %v304, %v303
    %v324 = vpack.c.b16 %v306, %v305
    %v325 = vpack.c.b16 %v308, %v307
    %v326 = vpack.c.b16 %v310, %v309
    %343 = vmatprep.subr.bf16.mxu0 0
    %344 = vmatpush1.bf16.msra.mxu0 %v318
    %345 = vmatprep.subr.bf16.mxu0 0
    %346 = vmatpush1.bf16.msra.mxu0 %v317
    %347 = vmatprep.subr.bf16.mxu0 0
    %348 = vmatpush1.bf16.msra.mxu0 %v316
    %349 = vmatprep.subr.bf16.mxu0 0
    %350 = vmatpush1.bf16.msra.mxu0 %v315
    %351 = vmatprep.subr.bf16.mxu0 0
    %352 = vmatpush1.bf16.msra.mxu0 %v314
    %353 = vmatprep.subr.bf16.mxu0 0
    %354 = vmatpush1.bf16.msra.mxu0 %v313
    %355 = vmatprep.subr.bf16.mxu0 0
    %356 = vmatpush1.bf16.msra.mxu0 %v312
    %357 = vmatprep.subr.bf16.mxu0 0
    %358 = vmatpush1.bf16.msra.mxu0 %v311
    %359 = vmatprep.subr.bf16.mxu0 0
    %360 = vmatpush2.bf16.msra.mxu0 %v326
    %361 = vmatprep.subr.bf16.mxu0 0
    %362 = vmatpush2.bf16.msra.mxu0 %v325
    %363 = vmatprep.subr.bf16.mxu0 0
    %364 = vmatpush2.bf16.msra.mxu0 %v324
    %365 = vmatprep.subr.bf16.mxu0 0
    %366 = vmatpush2.bf16.msra.mxu0 %v323
    %367 = vmatprep.subr.bf16.mxu0 0
    %368 = vmatpush2.bf16.msra.mxu0 %v322
    %369 = vmatprep.subr.bf16.mxu0 0
    %370 = vmatpush2.bf16.msra.mxu0 %v321
    %371 = vmatprep.subr.bf16.mxu0 0
    %372 = vmatpush2.bf16.msra.mxu0 %v320
    %373 = vmatprep.subr.bf16.mxu0 0
    %374 = vmatpush2.bf16.msra.mxu0 %v319
    %375 = vmatprep.mubr.bf16.mxu0 %v184
    %376 = vmatmul.mubr.bf16.gmra.mxu0 %v183
    %v377 = vpop.f32.mrf.mxu0
    %v378 = vadd.f32 %v85, %v377
    %v379 = vpop.f32.mrf.mxu0
    %v380 = vpop.f32.mrf.mxu0
    %v381 = vadd.f32 %v85, %v380
    %v382 = vpop.f32.mrf.mxu0
    %383 = vmatprep.mubr.bf16.mxu0 %v186
    %384 = vmatmul.mubr.bf16.gmra.mxu0 %v185
    %v385 = vpop.f32.mrf.mxu0
    %v386 = vadd.f32 %v85, %v385
    %v387 = vpop.f32.mrf.mxu0
    %v388 = vpop.f32.mrf.mxu0
    %v389 = vadd.f32 %v85, %v388
    %v390 = vpop.f32.mrf.mxu0
    %391 = vmatprep.mubr.bf16.mxu0 %v188
    %392 = vmatmul.mubr.bf16.gmra.mxu0 %v187
    %v393 = vpop.f32.mrf.mxu0
    %v394 = vadd.f32 %v85, %v393
    %v395 = vpop.f32.mrf.mxu0
    %v396 = vpop.f32.mrf.mxu0
    %v397 = vadd.f32 %v85, %v396
    %v398 = vpop.f32.mrf.mxu0
    %399 = vmatprep.mubr.bf16.mxu0 %v190
    %400 = vmatmul.mubr.bf16.gmra.mxu0 %v189
    %v401 = vpop.f32.mrf.mxu0
    %v402 = vadd.f32 %v85, %v401
    %v403 = vpop.f32.mrf.mxu0
    %v404 = vpop.f32.mrf.mxu0
    %v405 = vadd.f32 %v85, %v404
    %v406 = vpop.f32.mrf.mxu0
    %407 = vmatprep.mubr.bf16.mxu0 %v192
    %408 = vmatmul.mubr.bf16.gmra.mxu0 %v191
    %v409 = vpop.f32.mrf.mxu0
    %v410 = vadd.f32 %v85, %v409
    %v411 = vpop.f32.mrf.mxu0
    %v412 = vpop.f32.mrf.mxu0
    %v413 = vadd.f32 %v85, %v412
    %v414 = vpop.f32.mrf.mxu0
    %415 = vmatprep.mubr.bf16.mxu0 %v194
    %416 = vmatmul.mubr.bf16.gmra.mxu0 %v193
    %v417 = vpop.f32.mrf.mxu0
    %v418 = vadd.f32 %v85, %v417
    %v419 = vpop.f32.mrf.mxu0
    %v420 = vpop.f32.mrf.mxu0
    %v421 = vadd.f32 %v85, %v420
    %v422 = vpop.f32.mrf.mxu0
    %423 = vmatprep.mubr.bf16.mxu0 %v196
    %424 = vmatmul.mubr.bf16.gmra.mxu0 %v195
    %v425 = vpop.f32.mrf.mxu0
    %v426 = vadd.f32 %v85, %v425
    %v427 = vpop.f32.mrf.mxu0
    %v428 = vpop.f32.mrf.mxu0
    %v429 = vadd.f32 %v85, %v428
    %v430 = vpop.f32.mrf.mxu0
    %431 = vmatprep.mubr.bf16.mxu0 %v198
    %432 = vmatmul.mubr.bf16.gmra.mxu0 %v197
    %v433 = vpop.f32.mrf.mxu0
    %v434 = vadd.f32 %v85, %v433
    %v435 = vpop.f32.mrf.mxu0
    %v436 = vpop.f32.mrf.mxu0
    %v437 = vadd.f32 %v85, %v436
    %v438 = vpop.f32.mrf.mxu0
    %439 = vmatprep.mubr.bf16.mxu0 %v200
    %440 = vmatmul.mubr.bf16.gmra.mxu0 %v199
    %v441 = vpop.f32.mrf.mxu0
    %v442 = vadd.f32 %v85, %v441
    %v443 = vpop.f32.mrf.mxu0
    %v444 = vpop.f32.mrf.mxu0
    %v445 = vadd.f32 %v85, %v444
    %v446 = vpop.f32.mrf.mxu0
    %447 = vmatprep.mubr.bf16.mxu0 %v202
    %448 = vmatmul.mubr.bf16.gmra.mxu0 %v201
    %v449 = vpop.f32.mrf.mxu0
    %v450 = vadd.f32 %v85, %v449
    %v451 = vpop.f32.mrf.mxu0
    %v452 = vpop.f32.mrf.mxu0
    %v453 = vadd.f32 %v85, %v452
    %v454 = vpop.f32.mrf.mxu0
    %455 = vmatprep.mubr.bf16.mxu0 %v204
    %456 = vmatmul.mubr.bf16.gmra.mxu0 %v203
    %v457 = vpop.f32.mrf.mxu0
    %v458 = vadd.f32 %v85, %v457
    %v459 = vpop.f32.mrf.mxu0
    %v460 = vpop.f32.mrf.mxu0
    %v461 = vadd.f32 %v85, %v460
    %v462 = vpop.f32.mrf.mxu0
    %463 = vmatprep.mubr.bf16.mxu0 %v206
    %464 = vmatmul.mubr.bf16.gmra.mxu0 %v205
    %v465 = vpop.f32.mrf.mxu0
    %v466 = vadd.f32 %v85, %v465
    %v467 = vpop.f32.mrf.mxu0
    %v468 = vpop.f32.mrf.mxu0
    %v469 = vadd.f32 %v85, %v468
    %v470 = vpop.f32.mrf.mxu0
    %471 = vmatprep.mubr.bf16.mxu0 %v208
    %472 = vmatmul.mubr.bf16.gmra.mxu0 %v207
    %v473 = vpop.f32.mrf.mxu0
    %v474 = vadd.f32 %v85, %v473
    %v475 = vpop.f32.mrf.mxu0
    %v476 = vpop.f32.mrf.mxu0
    %v477 = vadd.f32 %v85, %v476
    %v478 = vpop.f32.mrf.mxu0
    %479 = vmatprep.mubr.bf16.mxu0 %v210
    %480 = vmatmul.mubr.bf16.gmra.mxu0 %v209
    %v481 = vpop.f32.mrf.mxu0
    %v482 = vadd.f32 %v85, %v481
    %v483 = vpop.f32.mrf.mxu0
    %v484 = vpop.f32.mrf.mxu0
    %v485 = vadd.f32 %v85, %v484
    %v486 = vpop.f32.mrf.mxu0
    %487 = vmatprep.mubr.bf16.mxu0 %v212
    %488 = vmatmul.mubr.bf16.gmra.mxu0 %v211
    %v489 = vpop.f32.mrf.mxu0
    %v490 = vadd.f32 %v85, %v489
    %v491 = vpop.f32.mrf.mxu0
    %v492 = vpop.f32.mrf.mxu0
    %v493 = vadd.f32 %v85, %v492
    %v494 = vpop.f32.mrf.mxu0
    %495 = vmatprep.mubr.bf16.mxu0 %v214
    %496 = vmatmul.mubr.bf16.gmra.mxu0 %v213
    %v497 = vpop.f32.mrf.mxu0
    %v498 = vadd.f32 %v85, %v497
    %v499 = vpop.f32.mrf.mxu0
    %v500 = vpop.f32.mrf.mxu0
    %v501 = vadd.f32 %v85, %v500
    %v502 = vpop.f32.mrf.mxu0
    %503 = vdwg.mxu0
    %v504 = vmax.f32 %v378, 0.0
    %v505 = vmax.f32 %v381, 0.0
    %v506 = vmax.f32 %v386, 0.0
    %v507 = vmax.f32 %v389, 0.0
    %v508 = vmax.f32 %v394, 0.0
    %v509 = vmax.f32 %v397, 0.0
    %v510 = vmax.f32 %v402, 0.0
    %v511 = vmax.f32 %v405, 0.0
    %v512 = vmax.f32 %v410, 0.0
    %v513 = vmax.f32 %v413, 0.0
    %v514 = vmax.f32 %v418, 0.0
    %v515 = vmax.f32 %v421, 0.0
    %v516 = vmax.f32 %v426, 0.0
    %v517 = vmax.f32 %v429, 0.0
    %v518 = vmax.f32 %v434, 0.0
    %v519 = vmax.f32 %v437, 0.0
    %v520 = vmax.f32 %v442, 0.0
    %v521 = vmax.f32 %v445, 0.0
    %v522 = vmax.f32 %v450, 0.0
    %v523 = vmax.f32 %v453, 0.0
    %v524 = vmax.f32 %v458, 0.0
    %v525 = vmax.f32 %v461, 0.0
    %v526 = vmax.f32 %v466, 0.0
    %v527 = vmax.f32 %v469, 0.0
    %v528 = vmax.f32 %v474, 0.0
    %v529 = vmax.f32 %v477, 0.0
    %v530 = vmax.f32 %v482, 0.0
    %v531 = vmax.f32 %v485, 0.0
    %v532 = vmax.f32 %v490, 0.0
    %v533 = vmax.f32 %v493, 0.0
    %v534 = vmax.f32 %v498, 0.0
    %v535 = vmax.f32 %v501, 0.0
    %536 = vst [vmem:[#allocation2] sm:$0xff] %v504
    %537 = vst [vmem:[#allocation2 + $0x8] sm:$0xff] %v505
    %538 = vst [vmem:[#allocation2 + $0x10] sm:$0xff] %v506
    %539 = vst [vmem:[#allocation2 + $0x18] sm:$0xff] %v507
    %540 = vst [vmem:[#allocation2 + $0x20] sm:$0xff] %v508
    %541 = vst [vmem:[#allocation2 + $0x28] sm:$0xff] %v509
    %542 = vst [vmem:[#allocation2 + $0x30] sm:$0xff] %v510
    %543 = vst [vmem:[#allocation2 + $0x38] sm:$0xff] %v511
    %544 = vst [vmem:[#allocation2 + $0x40] sm:$0xff] %v512
    %545 = vst [vmem:[#allocation2 + $0x48] sm:$0xff] %v513
    %546 = vst [vmem:[#allocation2 + $0x50] sm:$0xff] %v514
    %547 = vst [vmem:[#allocation2 + $0x58] sm:$0xff] %v515
    %548 = vst [vmem:[#allocation2 + $0x60] sm:$0xff] %v516
    %549 = vst [vmem:[#allocation2 + $0x68] sm:$0xff] %v517
    %550 = vst [vmem:[#allocation2 + $0x70] sm:$0xff] %v518
    %551 = vst [vmem:[#allocation2 + $0x78] sm:$0xff] %v519
    %552 = vst [vmem:[#allocation2 + $0x80] sm:$0xff] %v520
    %553 = vst [vmem:[#allocation2 + $0x88] sm:$0xff] %v521
    %554 = vst [vmem:[#allocation2 + $0x90] sm:$0xff] %v522
    %555 = vst [vmem:[#allocation2 + $0x98] sm:$0xff] %v523
    %556 = vst [vmem:[#allocation2 + $0xa0] sm:$0xff] %v524
    %557 = vst [vmem:[#allocation2 + $0xa8] sm:$0xff] %v525
    %558 = vst [vmem:[#allocation2 + $0xb0] sm:$0xff] %v526
    %559 = vst [vmem:[#allocation2 + $0xb8] sm:$0xff] %v527
    %560 = vst [vmem:[#allocation2 + $0xc0] sm:$0xff] %v528
    %561 = vst [vmem:[#allocation2 + $0xc8] sm:$0xff] %v529
    %562 = vst [vmem:[#allocation2 + $0xd0] sm:$0xff] %v530
    %563 = vst [vmem:[#allocation2 + $0xd8] sm:$0xff] %v531
    %564 = vst [vmem:[#allocation2 + $0xe0] sm:$0xff] %v532
    %565 = vst [vmem:[#allocation2 + $0xe8] sm:$0xff] %v533
    %566 = vst [vmem:[#allocation2 + $0xf0] sm:$0xff] %v534
    %567 = vst [vmem:[#allocation2 + $0xf8] sm:$0xff] %v535
    // Predicated region
    $region14: #{odefunc_forward.1} parent=1 // pred_check
      _
    $region15: #{odefunc_forward.1} parent=1 // pred_check_branch
      %569 = sbr.rel (0) target = $region17
    $region16: #{odefunc_forward.1} parent=1 // pred_region
      %s571 = ssub.s32 4096, 4096
      %572 = vsyncadd [#allocation3], %s571
      %s573 = sshll.u32 [#allocation2], 4
      %s574 = int_to_ptr.vmem [resolvable:$true] %s573
      %579 = dma.vmem_to_hbm [thread:$0]  %s574, 4096, %s3, [#allocation3], 128, 128, 8
    $region17: #{odefunc_forward.1} parent=1 // pred_fallthru
      _
    // Predicated region
    $region18: #{odefunc_forward.1} parent=1 // pred_check
      _
    $region19: #{odefunc_forward.1} parent=1 // pred_check_branch
      %581 = sbr.rel (0) target = $region21
    $region20: #{odefunc_forward.1} parent=1 // pred_region
      %582 = dma.done [#allocation3], 4096
    $region21: #{odefunc_forward.1} parent=1 // pred_fallthru
      _
    %583 = vsyncpa [#allocation3], 1

</llo_original>
